<compile_context>
chip_gen: v7x
topology: tpu7x:2x2x1
jax: 0.10.0
libtpu: 0.0.40
codegen_flags: <defaults>
</compile_context>

<pallas_src>
import jax
import jax.numpy as jnp
from jax.experimental import pallas as pl
from jax.experimental.pallas import tpu as pltpu


def _round_up(n, m):
    return ((n + m - 1) // m) * m


def _fused_affine_kernel(wc_ref, bc_ref, x_ref, o_ref):
    """Single fused affine per batch tile (trunk folded into the heads).

      wc_ref: [3, 8]        folded weight:  w @ [wh1 | wh2]
      bc_ref: [1, 8]        folded bias:    b @ [wh1 | wh2] + [bh1 | bh2]
      x_ref : [TILE_B, 3]   batch tile of x (batch on sublanes)
      o_ref : [TILE_B, 8]   fused output (cols 0:4 = head1, cols 4:8 = head2)
    """
    o_ref[...] = (jnp.dot(x_ref[...], wc_ref[...],
                          preferred_element_type=jnp.float32)
                  + bc_ref[...]).astype(o_ref.dtype)


def multihead_forward(x, params, *, tile_b=8192):
    """x: [B, 3] float32 -> (out1 [B, 4], out2 [B, 4])."""
    w, b, wh1, bh1, wh2, bh2 = params
    B = x.shape[0]

    # ---- tile-size selection -------------------------------------------
    #  * multiple of 128 (robust to caller values like 200; sublane dim stays
    #    8-aligned),
    #  * capped at 8192 (VMEM lane padding, see header comment),
    #  * no larger than the 128-padded batch,
    #  * prefer >= 2 grid steps so the "parallel" axis can use both
    #    TensorCores on megacore parts.
    b128 = _round_up(max(B, 1), 128)
    tile_b = _round_up(max(int(tile_b), 128), 128)
    tile_b = min(tile_b, 8192, b128)
    if (b128 // tile_b) < 2 and b128 >= 256:
        tile_b = min(_round_up((b128 + 1) // 2, 128), tile_b)
    b_pad = _round_up(B, tile_b)
    grid = (b_pad // tile_b,)

    # ---- fold trunk into the fused heads (tiny wrapper-side matmuls) ----
    wh = jnp.concatenate([wh1, wh2], axis=1)          # [2, 8]
    bh = jnp.concatenate([bh1, bh2], axis=1)          # [1, 8]
    wc = w @ wh                                       # [3, 8]
    bc = b @ wh + bh                                  # [1, 8]

    # Pad the batch only (no transpose).  Padded rows produce bias-only
    # garbage in the kernel and are sliced away below.
    xp = jnp.pad(x, ((0, b_pad - B), (0, 0)))

    out = pl.pallas_call(
        _fused_affine_kernel,
        out_shape=jax.ShapeDtypeStruct((b_pad, 8), x.dtype),
        grid_spec=pltpu.PrefetchScalarGridSpec(
            num_scalar_prefetch=0,
            grid=grid,
            in_specs=[
                pl.BlockSpec((3, 8), lambda i: (0, 0)),        # wc (VMEM resident)
                pl.BlockSpec((1, 8), lambda i: (0, 0)),        # bc (VMEM resident)
                pl.BlockSpec((tile_b, 3), lambda i: (i, 0)),   # x batch tile
            ],
            out_specs=pl.BlockSpec((tile_b, 8), lambda i: (i, 0)),
        ),
        compiler_params=pltpu.CompilerParams(
            dimension_semantics=("parallel",)),
    )(wc, bc, xp)

    # Strip batch padding and split the fused output into the two heads.
    # Pure slices, no transposes.  Do NOT drop the [:B] -- padded rows are
    # bias-only garbage.
    out1 = out[:B, :4]
    out2 = out[:B, 4:]
    return out1, out2


def init_params(key):
    """Deterministic init mimicking nn.Linear default (U[-1/sqrt(in), 1/sqrt(in)]).

    Weights stored as [in, out]; biases as [1, out].
    """
    ks = jax.random.split(key, 6)

    def linear(kw, kb, fan_in, fan_out):
        bound = 1.0 / jnp.sqrt(jnp.float32(fan_in))
        wgt = jax.random.uniform(kw, (fan_in, fan_out), jnp.float32, -bound, bound)
        bias = jax.random.uniform(kb, (1, fan_out), jnp.float32, -bound, bound)
        return wgt, bias

    w, b = linear(ks[0], ks[1], 3, 2)      # _linear: Linear(3, 2)
    wh1, bh1 = linear(ks[2], ks[3], 2, 4)  # _head1:  Linear(2, 4)
    wh2, bh2 = linear(ks[4], ks[5], 2, 4)  # _head2:  Linear(2, 4)
    return (w, b, wh1, bh1, wh2, bh2)


def _reference(x, params):
    w, b, wh1, bh1, wh2, bh2 = params
    feat = x @ w + b
    return feat @ wh1 + bh1, feat @ wh2 + bh2


if __name__ == "__main__":
    key = jax.random.PRNGKey(0)
    k_params, k_x, k_x2 = jax.random.split(key, 3)

    params = init_params(k_params)

    # Small case (module spec: batch of vectors with 3 features).
    B = 8
    x = jax.random.normal(k_x, (B, 3), jnp.float32)
    out1, out2 = multihead_forward(x, params)
    jax.block_until_ready((out1, out2))

    ref1, ref2 = _reference(x, params)
    assert out1.shape == (B, 4) and out2.shape == (B, 4)
    # Pre-folding the trunk changes f32 rounding order slightly; 1e-5 is ample.
    assert jnp.allclose(out1, ref1, atol=1e-5), "head1 mismatch"
    assert jnp.allclose(out2, ref2, atol=1e-5), "head2 mismatch"

    # Larger, non-multiple-of-tile batch with a non-multiple-of-128 tile_b:
    # exercises the tile rounding, padding and multi-step grid paths.
    B2 = 1000
    x2 = jax.random.normal(k_x2, (B2, 3), jnp.float32)
    o1b, o2b = multihead_forward(x2, params, tile_b=200)
    jax.block_until_ready((o1b, o2b))
    r1b, r2b = _reference(x2, params)
    assert o1b.shape == (B2, 4) and o2b.shape == (B2, 4)
    assert jnp.allclose(o1b, r1b, atol=1e-5), "head1 mismatch (tiled)"
    assert jnp.allclose(o2b, r2b, atol=1e-5), "head2 mismatch (tiled)"

    print("KERNEL_OK")
</pallas_src>

<mosaic_0001>
module attributes {stable_mosaic.version = 11 : i64} {
  func.func @_fused_affine_kernel(%arg0: i32, %arg1: memref<3x8xf32, #tpu.memory_space<vmem>>, %arg2: memref<1x8xf32, #tpu.memory_space<vmem>>, %arg3: memref<128x3xf32, #tpu.memory_space<vmem>>, %arg4: memref<128x8xf32, #tpu.memory_space<vmem>>) attributes {dimension_semantics = [#tpu.dimension_semantics<parallel>], iteration_bounds = array<i64: 1>, scalar_prefetch = 0 : i64, scratch_operands = 0 : i64, tpu.core_type = #tpu.core_type<tc>, window_params = [{pipeline_mode = #tpu.pipeline_mode<synchronous>, transform_indices = @transform_0, window_bounds = array<i64: 3, 8>}, {pipeline_mode = #tpu.pipeline_mode<synchronous>, transform_indices = @transform_1, window_bounds = array<i64: 1, 8>}, {transform_indices = @transform_2, window_bounds = array<i64: 128, 3>}, {transform_indices = @transform_3, window_bounds = array<i64: 128, 8>}]} {
    %c0 = arith.constant 0 : index
    %c0_0 = arith.constant 0 : index
    %0 = vector.load %arg3[%c0, %c0_0] : memref<128x3xf32, #tpu.memory_space<vmem>>, vector<128x3xf32>
    %c0_1 = arith.constant 0 : index
    %c0_2 = arith.constant 0 : index
    %1 = vector.load %arg1[%c0_1, %c0_2] : memref<3x8xf32, #tpu.memory_space<vmem>>, vector<3x8xf32>
    %cst = arith.constant dense<0.000000e+00> : vector<128x8xf32>
    %2 = tpu.matmul %0, %1, %cst {dimension_numbers = #tpu.dot_dimension_numbers<[1], [0], [0], [1], [0, 0, 1, 1], [], []>} : vector<128x3xf32>, vector<3x8xf32>, vector<128x8xf32> -> vector<128x8xf32>
    %c0_3 = arith.constant 0 : index
    %c0_4 = arith.constant 0 : index
    %3 = vector.load %arg2[%c0_3, %c0_4] : memref<1x8xf32, #tpu.memory_space<vmem>>, vector<1x8xf32>
    %4 = vector.broadcast %3 : vector<1x8xf32> to vector<128x8xf32>
    %5 = arith.addf %2, %4 : vector<128x8xf32>
    %c0_5 = arith.constant 0 : index
    %c0_6 = arith.constant 0 : index
    %6 = vector.load %arg4[%c0_5, %c0_6] : memref<128x8xf32, #tpu.memory_space<vmem>>, vector<128x8xf32>
    tpu.vector_store %arg4[%c0_5, %c0_6], %5 {strides = array<i32>} : memref<128x8xf32, #tpu.memory_space<vmem>>, vector<128x8xf32>,
    return
  }
  func.func @transform_0(%arg0: i32) -> (i32, i32) {
    %c0_i32 = arith.constant 0 : i32
    %c0_i32_0 = arith.constant 0 : i32
    %c0_i32_1 = arith.constant 0 : i32
    return %c0_i32, %c0_i32_0 : i32, i32
  }
  func.func @transform_1(%arg0: i32) -> (i32, i32) {
    %c0_i32 = arith.constant 0 : i32
    %c0_i32_0 = arith.constant 0 : i32
    %c0_i32_1 = arith.constant 0 : i32
    return %c0_i32, %c0_i32_0 : i32, i32
  }
  func.func @transform_2(%arg0: i32) -> (i32, i32) {
    %c0_i32 = arith.constant 0 : i32
    %c0_i32_0 = arith.constant 0 : i32
    return %arg0, %c0_i32 : i32, i32
  }
  func.func @transform_3(%arg0: i32) -> (i32, i32) {
    %c0_i32 = arith.constant 0 : i32
    %c0_i32_0 = arith.constant 0 : i32
    return %arg0, %c0_i32 : i32, i32
  }
}

</mosaic_0001>

<llo_original>
// kernel: tpu_custom_call.1
$region0: #{tpu_custom_call.1}
  #allocation0 [shape = 'u32[]', space=smem, size = 0x4, offset = 0x4, fixed_abs, tag = 'smem constant byte address 0x4 - core index']
  #allocation1 [shape = 'u32[144,128]{1,0:T(1,128)}', space=vmem, size = 0x12000, scoped, tag = 'internal scratch']
  %s0 = inlined_call_operand.vmem [shape: f32[3,8], index: 0, kind: input, shape index: {}]
  %s1 = inlined_call_operand.vmem [shape: f32[1,8], index: 1, kind: input, shape index: {}]
  %s2 = inlined_call_operand.vmem [shape: f32[128,3], index: 2, kind: input, shape index: {}]
  %s3 = inlined_call_operand.vmem [shape: f32[128,8], index: 3, kind: output, shape index: {}]
  %s4 = sld [smem:[#allocation0]]
  $region22: #{tpu_custom_call.1} parent=0
    _
  %s6 = ssub.s32 1, %s4
  %s7 = scalar_select 0, %s6, %s4
  // Predicated region
  $region2: #{tpu_custom_call.1} parent=0 // pred_check
    _
  $region3: #{tpu_custom_call.1} parent=0 // pred_check_branch
    %9 = sbr.rel (0) target = $region5
  $region4: #{tpu_custom_call.1} parent=0 // pred_region
    _
  $region5: #{tpu_custom_call.1} parent=0 // pred_fallthru
    _
  // Predicated region
  $region6: #{tpu_custom_call.1} parent=0 // pred_check
    _
  $region7: #{tpu_custom_call.1} parent=0 // pred_check_branch
    %11 = sbr.rel (0) target = $region9
  $region8: #{tpu_custom_call.1} parent=0 // pred_region
    _
  $region9: #{tpu_custom_call.1} parent=0 // pred_fallthru
    _
  // Predicated region
  $region10: #{tpu_custom_call.1} parent=0 // pred_check
    _
  $region11: #{tpu_custom_call.1} parent=0 // pred_check_branch
    %13 = sbr.rel (0) target = $region13
  $region12: #{tpu_custom_call.1} parent=0 // pred_region
    _
  $region13: #{tpu_custom_call.1} parent=0 // pred_fallthru
    _
  %v14 = vld [vmem:[%s2] sm:$0xff]
  %v15 = vld [vmem:[%s2 + $0x8] sm:$0xff]
  %v16 = vld [vmem:[%s2 + $0x10] sm:$0xff]
  %v17 = vld [vmem:[%s2 + $0x18] sm:$0xff]
  %v18 = vld [vmem:[%s2 + $0x20] sm:$0xff]
  %v19 = vld [vmem:[%s2 + $0x28] sm:$0xff]
  %v20 = vld [vmem:[%s2 + $0x30] sm:$0xff]
  %v21 = vld [vmem:[%s2 + $0x38] sm:$0xff]
  %v22 = vld [vmem:[%s2 + $0x40] sm:$0xff]
  %v23 = vld [vmem:[%s2 + $0x48] sm:$0xff]
  %v24 = vld [vmem:[%s2 + $0x50] sm:$0xff]
  %v25 = vld [vmem:[%s2 + $0x58] sm:$0xff]
  %v26 = vld [vmem:[%s2 + $0x60] sm:$0xff]
  %v27 = vld [vmem:[%s2 + $0x68] sm:$0xff]
  %v28 = vld [vmem:[%s2 + $0x70] sm:$0xff]
  %v29 = vld [vmem:[%s2 + $0x78] sm:$0xff]
  %v30 = vld [vmem:[%s0] sm:$0x7]
  %v31 = vld [vmem:[%s1] sm:$0x1]
  %v33 = vlaneseq
  %v34 = vshrl.u32 %v33, 7
  %v35 = vsub.s32 0, %v34
  %v36 = vrot.slane %v31, %v35
  %vm38 = vcmask 23552
  %v40 = vsel %vm38, %v14, 0
  %v43 = vsel %vm38, %v15, 0
  %v46 = vsel %vm38, %v16, 0
  %v49 = vsel %vm38, %v17, 0
  %v52 = vsel %vm38, %v18, 0
  %v55 = vsel %vm38, %v19, 0
  %v58 = vsel %vm38, %v20, 0
  %v61 = vsel %vm38, %v21, 0
  %v64 = vsel %vm38, %v22, 0
  %v67 = vsel %vm38, %v23, 0
  %v70 = vsel %vm38, %v24, 0
  %v73 = vsel %vm38, %v25, 0
  %v76 = vsel %vm38, %v26, 0
  %v79 = vsel %vm38, %v27, 0
  %v82 = vsel %vm38, %v28, 0
  %v85 = vsel %vm38, %v29, 0
  %vm87 = vcmask 1042432
  %v89 = vsel %vm87, %v30, 0
  %91 = vmatprep.subr.mxu0 0.0
  %92 = vmatpush1.msra.mxu0 %v89
  %93 = vmatprep.subr.mxu0 0.0
  %94 = vmatpush1.msra.mxu0 0.0
  %95 = vmatprep.subr.mxu0 0.0
  %96 = vmatpush1.msra.mxu0 0.0
  %97 = vmatprep.subr.mxu0 0.0
  %98 = vmatpush1.msra.mxu0 0.0
  %99 = vmatprep.subr.mxu0 0.0
  %100 = vmatpush1.msra.mxu0 0.0
  %101 = vmatprep.subr.mxu0 0.0
  %102 = vmatpush1.msra.mxu0 0.0
  %103 = vmatprep.subr.mxu0 0.0
  %104 = vmatpush1.msra.mxu0 0.0
  %105 = vmatprep.subr.mxu0 0.0
  %106 = vmatpush1.msra.mxu0 0.0
  %107 = vmatprep.subr.mxu0 0.0
  %108 = vmatpush1.msra.mxu0 0.0
  %109 = vmatprep.subr.mxu0 0.0
  %110 = vmatpush1.msra.mxu0 0.0
  %111 = vmatprep.subr.mxu0 0.0
  %112 = vmatpush1.msra.mxu0 0.0
  %113 = vmatprep.subr.mxu0 0.0
  %114 = vmatpush1.msra.mxu0 0.0
  %115 = vmatprep.subr.mxu0 0.0
  %116 = vmatpush1.msra.mxu0 0.0
  %117 = vmatprep.subr.mxu0 0.0
  %118 = vmatpush1.msra.mxu0 0.0
  %119 = vmatprep.subr.mxu0 0.0
  %120 = vmatpush1.msra.mxu0 0.0
  %121 = vmatprep.subr.mxu0 0.0
  %122 = vmatpush1.msra.mxu0 0.0
  %123 = vmatprep.subr.mxu0 0.0
  %124 = vmatpush1.msra.mxu0 0.0
  %125 = vmatprep.subr.mxu0 0.0
  %126 = vmatpush1.msra.mxu0 0.0
  %127 = vmatprep.subr.mxu0 0.0
  %128 = vmatpush1.msra.mxu0 0.0
  %129 = vmatprep.subr.mxu0 0.0
  %130 = vmatpush1.msra.mxu0 0.0
  %131 = vmatprep.subr.mxu0 0.0
  %132 = vmatpush1.msra.mxu0 0.0
  %133 = vmatprep.subr.mxu0 0.0
  %134 = vmatpush1.msra.mxu0 0.0
  %135 = vmatprep.subr.mxu0 0.0
  %136 = vmatpush1.msra.mxu0 0.0
  %137 = vmatprep.subr.mxu0 0.0
  %138 = vmatpush1.msra.mxu0 0.0
  %139 = vmatprep.subr.mxu0 0.0
  %140 = vmatpush1.msra.mxu0 0.0
  %141 = vmatprep.subr.mxu0 0.0
  %142 = vmatpush1.msra.mxu0 0.0
  %143 = vmatprep.subr.mxu0 0.0
  %144 = vmatpush1.msra.mxu0 0.0
  %145 = vmatprep.subr.mxu0 0.0
  %146 = vmatpush1.msra.mxu0 0.0
  %147 = vmatprep.subr.mxu0 0.0
  %148 = vmatpush1.msra.mxu0 0.0
  %149 = vmatprep.subr.mxu0 0.0
  %150 = vmatpush1.msra.mxu0 0.0
  %151 = vmatprep.subr.mxu0 0.0
  %152 = vmatpush1.msra.mxu0 0.0
  %153 = vmatprep.subr.mxu0 0.0
  %154 = vmatpush1.msra.mxu0 0.0
  %155 = vmatprep.mubr.f32.mxu0 0.0
  %156 = vmatmul.mubr.f32.gmra.mrb[0].mxu0 %v40
  %v157 = vpop.f32.mrb[0].mxu0
  %v158 = vadd.f32 %v36, %v157
  %v159 = vpop.f32.mrb[0].mxu0
  %160 = vmatprep.mubr.f32.mxu0 0.0
  %161 = vmatmul.mubr.f32.gmra.mrb[0].mxu0 %v43
  %v162 = vpop.f32.mrb[0].mxu0
  %v163 = vadd.f32 %v36, %v162
  %v164 = vpop.f32.mrb[0].mxu0
  %165 = vmatprep.mubr.f32.mxu0 0.0
  %166 = vmatmul.mubr.f32.gmra.mrb[0].mxu0 %v46
  %v167 = vpop.f32.mrb[0].mxu0
  %v168 = vadd.f32 %v36, %v167
  %v169 = vpop.f32.mrb[0].mxu0
  %170 = vmatprep.mubr.f32.mxu0 0.0
  %171 = vmatmul.mubr.f32.gmra.mrb[0].mxu0 %v49
  %v172 = vpop.f32.mrb[0].mxu0
  %v173 = vadd.f32 %v36, %v172
  %v174 = vpop.f32.mrb[0].mxu0
  %175 = vmatprep.mubr.f32.mxu0 0.0
  %176 = vmatmul.mubr.f32.gmra.mrb[0].mxu0 %v52
  %v177 = vpop.f32.mrb[0].mxu0
  %v178 = vadd.f32 %v36, %v177
  %v179 = vpop.f32.mrb[0].mxu0
  %180 = vmatprep.mubr.f32.mxu0 0.0
  %181 = vmatmul.mubr.f32.gmra.mrb[0].mxu0 %v55
  %v182 = vpop.f32.mrb[0].mxu0
  %v183 = vadd.f32 %v36, %v182
  %v184 = vpop.f32.mrb[0].mxu0
  %185 = vmatprep.mubr.f32.mxu0 0.0
  %186 = vmatmul.mubr.f32.gmra.mrb[0].mxu0 %v58
  %v187 = vpop.f32.mrb[0].mxu0
  %v188 = vadd.f32 %v36, %v187
  %v189 = vpop.f32.mrb[0].mxu0
  %190 = vmatprep.mubr.f32.mxu0 0.0
  %191 = vmatmul.mubr.f32.gmra.mrb[0].mxu0 %v61
  %v192 = vpop.f32.mrb[0].mxu0
  %v193 = vadd.f32 %v36, %v192
  %v194 = vpop.f32.mrb[0].mxu0
  %195 = vmatprep.mubr.f32.mxu0 0.0
  %196 = vmatmul.mubr.f32.gmra.mrb[0].mxu0 %v64
  %v197 = vpop.f32.mrb[0].mxu0
  %v198 = vadd.f32 %v36, %v197
  %v199 = vpop.f32.mrb[0].mxu0
  %200 = vmatprep.mubr.f32.mxu0 0.0
  %201 = vmatmul.mubr.f32.gmra.mrb[0].mxu0 %v67
  %v202 = vpop.f32.mrb[0].mxu0
  %v203 = vadd.f32 %v36, %v202
  %v204 = vpop.f32.mrb[0].mxu0
  %205 = vmatprep.mubr.f32.mxu0 0.0
  %206 = vmatmul.mubr.f32.gmra.mrb[0].mxu0 %v70
  %v207 = vpop.f32.mrb[0].mxu0
  %v208 = vadd.f32 %v36, %v207
  %v209 = vpop.f32.mrb[0].mxu0
  %210 = vmatprep.mubr.f32.mxu0 0.0
  %211 = vmatmul.mubr.f32.gmra.mrb[0].mxu0 %v73
  %v212 = vpop.f32.mrb[0].mxu0
  %v213 = vadd.f32 %v36, %v212
  %v214 = vpop.f32.mrb[0].mxu0
  %215 = vmatprep.mubr.f32.mxu0 0.0
  %216 = vmatmul.mubr.f32.gmra.mrb[0].mxu0 %v76
  %v217 = vpop.f32.mrb[0].mxu0
  %v218 = vadd.f32 %v36, %v217
  %v219 = vpop.f32.mrb[0].mxu0
  %220 = vmatprep.mubr.f32.mxu0 0.0
  %221 = vmatmul.mubr.f32.gmra.mrb[0].mxu0 %v79
  %v222 = vpop.f32.mrb[0].mxu0
  %v223 = vadd.f32 %v36, %v222
  %v224 = vpop.f32.mrb[0].mxu0
  %225 = vmatprep.mubr.f32.mxu0 0.0
  %226 = vmatmul.mubr.f32.gmra.mrb[0].mxu0 %v82
  %v227 = vpop.f32.mrb[0].mxu0
  %v228 = vadd.f32 %v36, %v227
  %v229 = vpop.f32.mrb[0].mxu0
  %230 = vmatprep.mubr.f32.mxu0 0.0
  %231 = vmatmul.mubr.f32.gmra.mrb[0].mxu0 %v85
  %v232 = vpop.f32.mrb[0].mxu0
  %v233 = vadd.f32 %v36, %v232
  %v234 = vpop.f32.mrb[0].mxu0
  %235 = vdwg.mxu0
  %vm236 = vcmask 64512
  %237 = vst.msk [vmem:[%s3] sm:$0xff] %vm236, %v158
  %238 = vst.msk [vmem:[%s3 + $0x8] sm:$0xff] %vm236, %v163
  %239 = vst.msk [vmem:[%s3 + $0x10] sm:$0xff] %vm236, %v168
  %240 = vst.msk [vmem:[%s3 + $0x18] sm:$0xff] %vm236, %v173
  %241 = vst.msk [vmem:[%s3 + $0x20] sm:$0xff] %vm236, %v178
  %242 = vst.msk [vmem:[%s3 + $0x28] sm:$0xff] %vm236, %v183
  %243 = vst.msk [vmem:[%s3 + $0x30] sm:$0xff] %vm236, %v188
  %244 = vst.msk [vmem:[%s3 + $0x38] sm:$0xff] %vm236, %v193
  %245 = vst.msk [vmem:[%s3 + $0x40] sm:$0xff] %vm236, %v198
  %246 = vst.msk [vmem:[%s3 + $0x48] sm:$0xff] %vm236, %v203
  %247 = vst.msk [vmem:[%s3 + $0x50] sm:$0xff] %vm236, %v208
  %248 = vst.msk [vmem:[%s3 + $0x58] sm:$0xff] %vm236, %v213
  %249 = vst.msk [vmem:[%s3 + $0x60] sm:$0xff] %vm236, %v218
  %250 = vst.msk [vmem:[%s3 + $0x68] sm:$0xff] %vm236, %v223
  %251 = vst.msk [vmem:[%s3 + $0x70] sm:$0xff] %vm236, %v228
  %252 = vst.msk [vmem:[%s3 + $0x78] sm:$0xff] %vm236, %v233
  // Predicated region
  $region14: #{tpu_custom_call.1} parent=0 // pred_check
    _
  $region15: #{tpu_custom_call.1} parent=0 // pred_check_branch
    %254 = sbr.rel (0) target = $region17
  $region16: #{tpu_custom_call.1} parent=0 // pred_region
    _
  $region17: #{tpu_custom_call.1} parent=0 // pred_fallthru
    _
  // Predicated region
  $region18: #{tpu_custom_call.1} parent=0 // pred_check
    _
  $region19: #{tpu_custom_call.1} parent=0 // pred_check_branch
    %256 = sbr.rel (0) target = $region21
  $region20: #{tpu_custom_call.1} parent=0 // pred_region
    _
  $region21: #{tpu_custom_call.1} parent=0 // pred_fallthru
    _

</llo_original>
